<compile_context>
chip_gen: v5e
topology: v5e:2x2
jax: 0.10.0
libtpu: 0.0.40
codegen_flags: <defaults>
</compile_context>

<pallas_src>
import functools

import jax
import jax.numpy as jnp
from jax.experimental import pallas as pl
from jax.experimental.pallas import tpu as pltpu


def attention_kernel(hid_ref, enc_ref, mask_ref,
                     w_hid_ref, w_enc_ref, b_ref, v_ref,
                     out_ref):
    """Fused attention-score kernel for one batch tile.

    hid_ref   : [Bt, D]        decoder hidden (input dtype)
    enc_ref   : [Bt*S, 2H]     encoder outputs, flattened in the wrapper
    mask_ref  : [Bt, S]        int32 (0 = pad)
    w_hid_ref : [D, D]         attn-weight columns that multiply `hidden`
    w_enc_ref : [2H, D]        attn-weight columns that multiply enc_out
    b_ref     : [1, D]         attn bias (f32)
    v_ref     : [1, D]         v weight, no bias (f32)
    out_ref   : [Bt, S]        softmax attention weights (f32)
    """
    Bt, S = mask_ref.shape
    D = w_hid_ref.shape[1]

    # hidden projection ONCE per batch row (replaces repeat(hidden,S)+concat).
    hid_proj = (jnp.dot(hid_ref[...], w_hid_ref[...],
                        preferred_element_type=jnp.float32)
                + b_ref[...])                                        # [Bt, D] f32

    # encoder projection: one 2-D MXU GEMM over the flattened rows (no reshape
    # of the big tile inside the kernel).
    enc_proj = jnp.dot(enc_ref[...], w_enc_ref[...],
                       preferred_element_type=jnp.float32)           # [Bt*S, D] f32

    # energy = tanh(attn(cat(hidden, enc_out)))  (split matmul == concat matmul)
    # reshape of the small f32 enc_proj is a layout no-op when S % 8 == 0.
    energy = jnp.tanh(enc_proj.reshape(Bt, S, D) + hid_proj[:, None, :])

    # score_{b,s} = <energy_{b,s,:}, v>  -- VPU mul + lane reduce over D
    # (kept off the MXU: a width-1 matmul would waste the systolic array).
    scores = jnp.sum(energy * v_ref[...][None, :, :], axis=-1)       # [Bt, S] f32

    # masked_fill(mask == 0, -1e10), then softmax over src_len (all in f32).
    scores = jnp.where(mask_ref[...] == 0, jnp.float32(-1.0e10), scores)
    m = jnp.max(scores, axis=-1, keepdims=True)
    e = jnp.exp(scores - m)
    denom = jnp.sum(e, axis=-1, keepdims=True)
    inv = pl.reciprocal(denom, approx=True)       # EUP slot
    inv = inv * (2.0 - denom * inv)               # one Newton step -> ~f32 exact
    out_ref[...] = (e * inv).astype(out_ref.dtype)


def _select_block_b(B, per_row_bytes, weight_buf_bytes, budget_bytes):
    """Pick a batch tile: multiple of 8 dividing B, fitting the VMEM budget,
    preferring a grid of >= 8 steps (pipelining depth / v7x dual-core)."""
    if B <= 8:
        return B
    usable = max(budget_bytes - weight_buf_bytes, per_row_bytes)
    max_rows = max(1, usable // per_row_bytes)
    cands = [b for b in range(8, B + 1, 8) if B % b == 0 and b <= max_rows]
    if not cands:
        # Nothing 8-aligned fits / divides: smallest 8-row tile if possible.
        # TODO(synk): support partial (non-divisor) tiles for awkward B.
        return 8 if B % 8 == 0 else B
    for min_steps in (8, 2):
        good = [b for b in cands if B // b >= min_steps]
        if good:
            return max(good)
    return max(cands)


def attention_forward(hidden, encoder_outputs, mask, params, *, block_b=None):
    B, S, E2 = encoder_outputs.shape
    D = hidden.shape[1]

    # ---- parameter prep (glue): split attn weight so the concat never exists.
    # cat order in the reference is (hidden, encoder_outputs): first D input
    # columns multiply `hidden`, the remaining 2H multiply encoder_outputs.
    w = params["attn_w"]                                  # [D, D + 2H]
    w_hid = w[:, :D].T.astype(hidden.dtype)               # [D, D]   (MXU dtype = input dtype)
    w_enc = w[:, D:].T.astype(encoder_outputs.dtype)      # [2H, D]
    b_attn = params["attn_b"].reshape(1, D).astype(jnp.float32)
    v_w = params["v_w"].reshape(1, D).astype(jnp.float32)
    mask_i = mask.astype(jnp.int32)

    # Flatten the big tensor in the wrapper (free under jit) -> 2-D kernel GEMM.
    enc2d = encoder_outputs.reshape(B * S, E2)

    # ---- per-generation VMEM budgeting -------------------------------------
    try:
        phys_vmem = int(pltpu.get_tpu_info().vmem_capacity_bytes)
    except Exception:
        phys_vmem = 64 * 1024 * 1024          # v7x per-TC: most conservative
    enc_isz = encoder_outputs.dtype.itemsize
    hid_isz = hidden.dtype.itemsize
    # Per-batch-row footprint of one pipeline stage: double-buffered tiles +
    # the f32 enc_proj / energy temporaries materialized in the kernel.
    per_row = (2 * S * E2 * enc_isz            # encoder tile (2 buffers)
               + 2 * S * 4 + 2 * S * 4         # mask + output tiles (2 buffers)
               + 2 * D * hid_isz               # hidden tile (2 buffers)
               + 3 * S * D * 4)                # f32 intermediates
    weight_bytes = (w_hid.size * w_hid.dtype.itemsize
                    + w_enc.size * w_enc.dtype.itemsize
                    + 2 * D * 4)               # bias + v
    work_budget = int(phys_vmem * 0.45)        # headroom for compiler scratch

    if block_b is None:
        block_b = _select_block_b(B, per_row, 2 * weight_bytes, work_budget)
    elif block_b <= 0 or B % block_b != 0 or (block_b != B and block_b % 8 != 0):
        raise ValueError(
            f"block_b={block_b} must divide B={B} and be a multiple of 8 "
            f"(or equal B); refusing to silently fall back to the whole batch.")

    grid = (B // block_b,)
    footprint = 2 * weight_bytes + block_b * per_row
    vmem_limit = min(int(phys_vmem * 0.8), max(footprint + (8 << 20), 32 << 20))

    out = pl.pallas_call(
        attention_kernel,
        out_shape=jax.ShapeDtypeStruct((B, S), jnp.float32),
        grid=grid,
        in_specs=[
            pl.BlockSpec((block_b, D), lambda i: (i, 0)),          # hidden
            pl.BlockSpec((block_b * S, E2), lambda i: (i, 0)),     # enc (flattened)
            pl.BlockSpec((block_b, S), lambda i: (i, 0)),          # mask
            pl.BlockSpec((D, D), lambda i: (0, 0)),                # w_hid (broadcast)
            pl.BlockSpec((E2, D), lambda i: (0, 0)),               # w_enc (broadcast)
            pl.BlockSpec((1, D), lambda i: (0, 0)),                # bias
            pl.BlockSpec((1, D), lambda i: (0, 0)),                # v
        ],
        out_specs=pl.BlockSpec((block_b, S), lambda i: (i, 0)),
        compiler_params=pltpu.CompilerParams(
            dimension_semantics=("parallel",),
            vmem_limit_bytes=int(vmem_limit)),
    )(hidden, enc2d, mask_i, w_hid, w_enc, b_attn, v_w)
    return out


def init_params(key, enc_hid_dim, dec_hid_dim):
    """Mimics nn.Linear default init (uniform +/- 1/sqrt(fan_in))."""
    k1, k2, k3 = jax.random.split(key, 3)
    in_dim = enc_hid_dim * 2 + dec_hid_dim
    s_attn = 1.0 / jnp.sqrt(jnp.float32(in_dim))
    s_v = 1.0 / jnp.sqrt(jnp.float32(dec_hid_dim))
    return {
        # PyTorch layout: attn.weight [D, D + 2H] (input order: hidden, enc_out)
        "attn_w": jax.random.uniform(k1, (dec_hid_dim, in_dim), jnp.float32,
                                     -s_attn, s_attn),
        "attn_b": jax.random.uniform(k2, (dec_hid_dim,), jnp.float32,
                                     -s_attn, s_attn),
        # v.weight [1, D], no bias
        "v_w": jax.random.uniform(k3, (1, dec_hid_dim), jnp.float32, -s_v, s_v),
    }


def _reference_forward(hidden, encoder_outputs, mask, params):
    """Pure-JAX reference (same math as the PyTorch module)."""
    B, S, _ = encoder_outputs.shape
    hid_rep = jnp.repeat(hidden[:, None, :].astype(jnp.float32), S, axis=1)
    cat = jnp.concatenate([hid_rep, encoder_outputs.astype(jnp.float32)], axis=2)
    energy = jnp.tanh(cat @ params["attn_w"].T + params["attn_b"])
    attention = jnp.squeeze(energy @ params["v_w"].T, axis=2)
    attention = jnp.where(mask == 0, jnp.float32(-1.0e10), attention)
    return jax.nn.softmax(attention, axis=1)


def _check(hidden, encoder_outputs, mask, params, fwd):
    attn = fwd(hidden, encoder_outputs, mask, params)
    jax.block_until_ready(attn)
    ref = _reference_forward(hidden, encoder_outputs, mask, params)
    assert attn.shape == mask.shape
    assert jnp.allclose(attn, ref, rtol=1e-4, atol=1e-4)
    assert jnp.allclose(attn.sum(axis=1),
                        jnp.ones((mask.shape[0],), jnp.float32), atol=1e-5)
    return attn


if __name__ == "__main__":
    ENC_HID_DIM = 32
    DEC_HID_DIM = 32

    key = jax.random.PRNGKey(0)
    pkey, hkey, ekey, h2key, e2key, lkey = jax.random.split(key, 6)
    params = init_params(pkey, ENC_HID_DIM, DEC_HID_DIM)

    fwd = jax.jit(attention_forward)

    # --- small config (matches the module's tiny example shapes) ------------
    B, S = 2, 8
    hidden = jax.random.normal(hkey, (B, DEC_HID_DIM), jnp.float32)
    encoder_outputs = jax.random.normal(ekey, (B, S, 2 * ENC_HID_DIM), jnp.float32)
    lens = jnp.array([S, 5], dtype=jnp.int32)           # second row padded after 5
    mask = (jnp.arange(S)[None, :] < lens[:, None]).astype(jnp.int32)
    attn = _check(hidden, encoder_outputs, mask, params, fwd)
    assert float(jnp.max(attn[1, 5:])) < 1e-6           # padded positions ~0 weight

    # --- tiled config: exercises the multi-step batch grid ------------------
    B2, S2 = 16, 16
    hidden2 = jax.random.normal(h2key, (B2, DEC_HID_DIM), jnp.float32)
    encoder_outputs2 = jax.random.normal(e2key, (B2, S2, 2 * ENC_HID_DIM), jnp.float32)
    lens2 = jax.random.randint(lkey, (B2,), 1, S2 + 1)
    mask2 = (jnp.arange(S2)[None, :] < lens2[:, None]).astype(jnp.int32)
    _check(hidden2, encoder_outputs2, mask2, params, fwd)

    print("KERNEL_OK")
</pallas_src>

<mosaic_0001>
module attributes {stable_mosaic.version = 11 : i64} {
  func.func @attention_kernel(%arg0: i32, %arg1: memref<2x32xf32, #tpu.memory_space<vmem>>, %arg2: memref<16x64xf32, #tpu.memory_space<vmem>>, %arg3: memref<2x8xi32, #tpu.memory_space<vmem>>, %arg4: memref<32x32xf32, #tpu.memory_space<vmem>>, %arg5: memref<64x32xf32, #tpu.memory_space<vmem>>, %arg6: memref<1x32xf32, #tpu.memory_space<vmem>>, %arg7: memref<1x32xf32, #tpu.memory_space<vmem>>, %arg8: memref<2x8xf32, #tpu.memory_space<vmem>>) attributes {dimension_semantics = [#tpu.dimension_semantics<parallel>], iteration_bounds = array<i64: 1>, scalar_prefetch = 0 : i64, scratch_operands = 0 : i64, tpu.core_type = #tpu.core_type<tc>, window_params = [{transform_indices = @transform_0, window_bounds = array<i64: 2, 32>}, {transform_indices = @transform_1, window_bounds = array<i64: 16, 64>}, {transform_indices = @transform_2, window_bounds = array<i64: 2, 8>}, {pipeline_mode = #tpu.pipeline_mode<synchronous>, transform_indices = @transform_3, window_bounds = array<i64: 32, 32>}, {pipeline_mode = #tpu.pipeline_mode<synchronous>, transform_indices = @transform_4, window_bounds = array<i64: 64, 32>}, {pipeline_mode = #tpu.pipeline_mode<synchronous>, transform_indices = @transform_5, window_bounds = array<i64: 1, 32>}, {pipeline_mode = #tpu.pipeline_mode<synchronous>, transform_indices = @transform_6, window_bounds = array<i64: 1, 32>}, {transform_indices = @transform_7, window_bounds = array<i64: 2, 8>}]} {
    %c0 = arith.constant 0 : index
    %c0_0 = arith.constant 0 : index
    %0 = vector.load %arg1[%c0, %c0_0] : memref<2x32xf32, #tpu.memory_space<vmem>>, vector<2x32xf32>
    %c0_1 = arith.constant 0 : index
    %c0_2 = arith.constant 0 : index
    %1 = vector.load %arg4[%c0_1, %c0_2] : memref<32x32xf32, #tpu.memory_space<vmem>>, vector<32x32xf32>
    %cst = arith.constant dense<0.000000e+00> : vector<2x32xf32>
    %2 = tpu.matmul %0, %1, %cst {dimension_numbers = #tpu.dot_dimension_numbers<[1], [0], [0], [1], [0, 0, 1, 1], [], []>} : vector<2x32xf32>, vector<32x32xf32>, vector<2x32xf32> -> vector<2x32xf32>
    %c0_3 = arith.constant 0 : index
    %c0_4 = arith.constant 0 : index
    %3 = vector.load %arg6[%c0_3, %c0_4] : memref<1x32xf32, #tpu.memory_space<vmem>>, vector<1x32xf32>
    %4 = vector.broadcast %3 : vector<1x32xf32> to vector<2x32xf32>
    %5 = arith.addf %2, %4 : vector<2x32xf32>
    %c0_5 = arith.constant 0 : index
    %c0_6 = arith.constant 0 : index
    %6 = vector.load %arg2[%c0_5, %c0_6] : memref<16x64xf32, #tpu.memory_space<vmem>>, vector<16x64xf32>
    %c0_7 = arith.constant 0 : index
    %c0_8 = arith.constant 0 : index
    %7 = vector.load %arg5[%c0_7, %c0_8] : memref<64x32xf32, #tpu.memory_space<vmem>>, vector<64x32xf32>
    %cst_9 = arith.constant dense<0.000000e+00> : vector<16x32xf32>
    %8 = tpu.matmul %6, %7, %cst_9 {dimension_numbers = #tpu.dot_dimension_numbers<[1], [0], [0], [1], [0, 0, 1, 1], [], []>} : vector<16x64xf32>, vector<64x32xf32>, vector<16x32xf32> -> vector<16x32xf32>
    %9 = vector.shape_cast %8 : vector<16x32xf32> to vector<2x8x32xf32>
    %10 = vector.shape_cast %5 : vector<2x32xf32> to vector<2x1x32xf32>
    %11 = vector.broadcast %10 : vector<2x1x32xf32> to vector<2x8x32xf32>
    %12 = arith.addf %9, %11 : vector<2x8x32xf32>
    %13 = math.tanh %12 : vector<2x8x32xf32>
    %c0_10 = arith.constant 0 : index
    %c0_11 = arith.constant 0 : index
    %14 = vector.load %arg7[%c0_10, %c0_11] : memref<1x32xf32, #tpu.memory_space<vmem>>, vector<1x32xf32>
    %15 = vector.shape_cast %14 : vector<1x32xf32> to vector<1x1x32xf32>
    %16 = vector.broadcast %15 : vector<1x1x32xf32> to vector<2x8x32xf32>
    %17 = arith.mulf %13, %16 : vector<2x8x32xf32>
    %cst_12 = arith.constant dense<0.000000e+00> : vector<2x8xf32>
    %18 = vector.multi_reduction <add>, %17, %cst_12 [2] : vector<2x8x32xf32> to vector<2x8xf32>
    %c0_13 = arith.constant 0 : index
    %c0_14 = arith.constant 0 : index
    %19 = vector.load %arg3[%c0_13, %c0_14] : memref<2x8xi32, #tpu.memory_space<vmem>>, vector<2x8xi32>
    %c0_i32 = arith.constant 0 : i32
    %20 = vector.broadcast %c0_i32 : i32 to vector<2x8xi32>
    %21 = arith.cmpi eq, %19, %20 : vector<2x8xi32>
    %cst_15 = arith.constant -1.000000e+10 : f32
    %22 = vector.broadcast %cst_15 : f32 to vector<2x8xf32>
    %23 = arith.select %21, %22, %18 : vector<2x8xi1>, vector<2x8xf32>
    %cst_16 = arith.constant dense<0xFF800000> : vector<2xf32>
    %24 = vector.multi_reduction <maximumf>, %23, %cst_16 [1] : vector<2x8xf32> to vector<2xf32>
    %25 = vector.shape_cast %24 : vector<2xf32> to vector<2x1xf32>
    %26 = vector.broadcast %25 : vector<2x1xf32> to vector<2x8xf32>
    %27 = arith.subf %23, %26 : vector<2x8xf32>
    %28 = math.exp %27 : vector<2x8xf32>
    %cst_17 = arith.constant dense<0.000000e+00> : vector<2xf32>
    %29 = vector.multi_reduction <add>, %28, %cst_17 [1] : vector<2x8xf32> to vector<2xf32>
    %30 = vector.shape_cast %29 : vector<2xf32> to vector<2x1xf32>
    %31 = tpu.reciprocal %30 {approx = true} : vector<2x1xf32> -> vector<2x1xf32>
    %32 = arith.mulf %30, %31 : vector<2x1xf32>
    %cst_18 = arith.constant 2.000000e+00 : f32
    %33 = vector.broadcast %cst_18 : f32 to vector<2x1xf32>
    %34 = arith.subf %33, %32 : vector<2x1xf32>
    %35 = arith.mulf %31, %34 : vector<2x1xf32>
    %36 = vector.broadcast %35 : vector<2x1xf32> to vector<2x8xf32>
    %37 = arith.mulf %28, %36 : vector<2x8xf32>
    %c0_19 = arith.constant 0 : index
    %c0_20 = arith.constant 0 : index
    %38 = vector.load %arg8[%c0_19, %c0_20] : memref<2x8xf32, #tpu.memory_space<vmem>>, vector<2x8xf32>
    tpu.vector_store %arg8[%c0_19, %c0_20], %37 {strides = array<i32>} : memref<2x8xf32, #tpu.memory_space<vmem>>, vector<2x8xf32>,
    return
  }
  func.func @transform_0(%arg0: i32) -> (i32, i32) {
    %c0_i32 = arith.constant 0 : i32
    %c0_i32_0 = arith.constant 0 : i32
    return %arg0, %c0_i32 : i32, i32
  }
  func.func @transform_1(%arg0: i32) -> (i32, i32) {
    %c0_i32 = arith.constant 0 : i32
    %c0_i32_0 = arith.constant 0 : i32
    return %arg0, %c0_i32 : i32, i32
  }
  func.func @transform_2(%arg0: i32) -> (i32, i32) {
    %c0_i32 = arith.constant 0 : i32
    %c0_i32_0 = arith.constant 0 : i32
    return %arg0, %c0_i32 : i32, i32
  }
  func.func @transform_3(%arg0: i32) -> (i32, i32) {
    %c0_i32 = arith.constant 0 : i32
    %c0_i32_0 = arith.constant 0 : i32
    %c0_i32_1 = arith.constant 0 : i32
    return %c0_i32, %c0_i32_0 : i32, i32
  }
  func.func @transform_4(%arg0: i32) -> (i32, i32) {
    %c0_i32 = arith.constant 0 : i32
    %c0_i32_0 = arith.constant 0 : i32
    %c0_i32_1 = arith.constant 0 : i32
    return %c0_i32, %c0_i32_0 : i32, i32
  }
  func.func @transform_5(%arg0: i32) -> (i32, i32) {
    %c0_i32 = arith.constant 0 : i32
    %c0_i32_0 = arith.constant 0 : i32
    %c0_i32_1 = arith.constant 0 : i32
    return %c0_i32, %c0_i32_0 : i32, i32
  }
  func.func @transform_6(%arg0: i32) -> (i32, i32) {
    %c0_i32 = arith.constant 0 : i32
    %c0_i32_0 = arith.constant 0 : i32
    %c0_i32_1 = arith.constant 0 : i32
    return %c0_i32, %c0_i32_0 : i32, i32
  }
  func.func @transform_7(%arg0: i32) -> (i32, i32) {
    %c0_i32 = arith.constant 0 : i32
    %c0_i32_0 = arith.constant 0 : i32
    return %arg0, %c0_i32 : i32, i32
  }
}

</mosaic_0001>

<llo_original>
// kernel: attention_forward.1
$region0: #{attention_forward.1}
  #allocation0 [shape = 'u32[]', space=smem, size = 0x4, offset = 0x4, fixed_abs, tag = 'smem constant byte address 0x4 - core index']
  #allocation1 [shape = 'u32[72,128]{1,0:T(1,128)}', space=vmem, size = 0x9000, scoped, tag = 'internal scratch']
  %s0 = inlined_call_operand.vmem [shape: f32[2,32], index: 0, kind: input, shape index: {}]
  %s1 = inlined_call_operand.vmem [shape: f32[16,64], index: 1, kind: input, shape index: {}]
  %s2 = inlined_call_operand.vmem [shape: s32[2,8], index: 2, kind: input, shape index: {}]
  %s3 = inlined_call_operand.vmem [shape: f32[32,32], index: 3, kind: input, shape index: {}]
  %s4 = inlined_call_operand.vmem [shape: f32[64,32], index: 4, kind: input, shape index: {}]
  %s5 = inlined_call_operand.vmem [shape: f32[1,32], index: 5, kind: input, shape index: {}]
  %s6 = inlined_call_operand.vmem [shape: f32[1,32], index: 6, kind: input, shape index: {}]
  %s7 = inlined_call_operand.hbm [shape: f32[2,8], index: 7, kind: output, shape index: {}]
  %s8 = sld [smem:[#allocation0]]
  $region38: #{attention_forward.1} parent=0
    _
  %s10 = ssub.s32 1, %s8
  %s11 = scalar_select 0, %s10, %s8
  $region1: #{attention_forward.1} parent=0
    #allocation2 [shape = 'u8[1024]{0}', space=vmem, size = 0x400, scoped, tag = 'output window, operand 0, single buffered']
    #allocation3 [shape = 's32[1]{0}', space=sflag, size = 0x4, scoped, tag = 'scoped memory for attention_forward.1']
    %12 = vsyncpa [#allocation3], 0
    // Predicated region
    $region2: #{attention_forward.1} parent=1 // pred_check
      _
    $region3: #{attention_forward.1} parent=1 // pred_check_branch
      %14 = sbr.rel (0) target = $region5
    $region4: #{attention_forward.1} parent=1 // pred_region
      _
    $region5: #{attention_forward.1} parent=1 // pred_fallthru
      _
    // Predicated region
    $region6: #{attention_forward.1} parent=1 // pred_check
      _
    $region7: #{attention_forward.1} parent=1 // pred_check_branch
      %16 = sbr.rel (0) target = $region9
    $region8: #{attention_forward.1} parent=1 // pred_region
      _
    $region9: #{attention_forward.1} parent=1 // pred_fallthru
      _
    // Predicated region
    $region10: #{attention_forward.1} parent=1 // pred_check
      _
    $region11: #{attention_forward.1} parent=1 // pred_check_branch
      %18 = sbr.rel (0) target = $region13
    $region12: #{attention_forward.1} parent=1 // pred_region
      _
    $region13: #{attention_forward.1} parent=1 // pred_fallthru
      _
    // Predicated region
    $region14: #{attention_forward.1} parent=1 // pred_check
      _
    $region15: #{attention_forward.1} parent=1 // pred_check_branch
      %20 = sbr.rel (0) target = $region17
    $region16: #{attention_forward.1} parent=1 // pred_region
      _
    $region17: #{attention_forward.1} parent=1 // pred_fallthru
      _
    // Predicated region
    $region18: #{attention_forward.1} parent=1 // pred_check
      _
    $region19: #{attention_forward.1} parent=1 // pred_check_branch
      %22 = sbr.rel (0) target = $region21
    $region20: #{attention_forward.1} parent=1 // pred_region
      _
    $region21: #{attention_forward.1} parent=1 // pred_fallthru
      _
    // Predicated region
    $region22: #{attention_forward.1} parent=1 // pred_check
      _
    $region23: #{attention_forward.1} parent=1 // pred_check_branch
      %24 = sbr.rel (0) target = $region25
    $region24: #{attention_forward.1} parent=1 // pred_region
      _
    $region25: #{attention_forward.1} parent=1 // pred_fallthru
      _
    // Predicated region
    $region26: #{attention_forward.1} parent=1 // pred_check
      _
    $region27: #{attention_forward.1} parent=1 // pred_check_branch
      %26 = sbr.rel (0) target = $region29
    $region28: #{attention_forward.1} parent=1 // pred_region
      _
    $region29: #{attention_forward.1} parent=1 // pred_fallthru
      _
    %v27 = vld [vmem:[%s0] sm:$0x3]
    %v28 = vld [vmem:[%s3] sm:$0xff]
    %v29 = vld [vmem:[%s3 + $0x8] sm:$0xff]
    %v30 = vld [vmem:[%s3 + $0x10] sm:$0xff]
    %v31 = vld [vmem:[%s3 + $0x18] sm:$0xff]
    %v32 = vld [vmem:[%s5] sm:$0x1]
    %v34 = vperm.slane %v32, 0
    %vm36 = vcmask 261120
    %v38 = vsel %vm36, %v27, 0
    %40 = vmatpush.msra.mxu0 0.0
    %41 = vmatpush.msra.mxu0 0.0
    %42 = vmatpush.msra.mxu0 0.0
    %43 = vmatpush.msra.mxu0 0.0
    %44 = vmatpush.msra.mxu0 0.0
    %45 = vmatpush.msra.mxu0 0.0
    %46 = vmatpush.msra.mxu0 0.0
    %47 = vmatpush.msra.mxu0 0.0
    %48 = vmatpush.msra.mxu0 0.0
    %49 = vmatpush.msra.mxu0 0.0
    %50 = vmatpush.msra.mxu0 0.0
    %51 = vmatpush.msra.mxu0 0.0
    %52 = vmatpush.msra.mxu0 %v31
    %53 = vmatpush.msra.mxu0 %v30
    %54 = vmatpush.msra.mxu0 %v29
    %55 = vmatpush.msra.mxu0 %v28
    %56 = vmatmul.f32.gmra.mxu0 %v38
    %v57 = vpop.f32.mrf.mxu0
    %v58 = vadd.f32 %v34, %v57
    %59 = vdwg.mxu0
    %v60 = vld [vmem:[%s1] sm:$0xff]
    %v61 = vld [vmem:[%s1 + $0x8] sm:$0xff]
    %v62 = vld [vmem:[%s4] sm:$0xff]
    %v63 = vld [vmem:[%s4 + $0x8] sm:$0xff]
    %v64 = vld [vmem:[%s4 + $0x10] sm:$0xff]
    %v65 = vld [vmem:[%s4 + $0x18] sm:$0xff]
    %v66 = vld [vmem:[%s4 + $0x20] sm:$0xff]
    %v67 = vld [vmem:[%s4 + $0x28] sm:$0xff]
    %v68 = vld [vmem:[%s4 + $0x30] sm:$0xff]
    %v69 = vld [vmem:[%s4 + $0x38] sm:$0xff]
    %vm70 = vcmask 523264
    %v72 = vsel %vm70, %v60, 0
    %v75 = vsel %vm70, %v61, 0
    %77 = vmatpush.msra.mxu0 0.0
    %78 = vmatpush.msra.mxu0 0.0
    %79 = vmatpush.msra.mxu0 0.0
    %80 = vmatpush.msra.mxu0 0.0
    %81 = vmatpush.msra.mxu0 0.0
    %82 = vmatpush.msra.mxu0 0.0
    %83 = vmatpush.msra.mxu0 0.0
    %84 = vmatpush.msra.mxu0 0.0
    %85 = vmatpush.msra.mxu0 %v69
    %86 = vmatpush.msra.mxu0 %v68
    %87 = vmatpush.msra.mxu0 %v67
    %88 = vmatpush.msra.mxu0 %v66
    %89 = vmatpush.msra.mxu0 %v65
    %90 = vmatpush.msra.mxu0 %v64
    %91 = vmatpush.msra.mxu0 %v63
    %92 = vmatpush.msra.mxu0 %v62
    %93 = vmatmul.f32.gmra.mxu0 %v72
    %v94 = vpop.f32.mrf.mxu0
    %v95 = vadd.f32 0.0, %v94
    %96 = vmatmul.f32.gmra.mxu0 %v75
    %v97 = vpop.f32.mrf.mxu0
    %v98 = vadd.f32 0.0, %v97
    %99 = vdwg.mxu0
    %v101 = vrot.slane %v58, 1
    %v102 = vperm.slane %v58, 0
    %v103 = vperm.slane %v101, 0
    %v106 = vadd.f32 %v95, %v102
    %v107 = vadd.f32 %v98, %v103
    %v108 = vtanh.pop %v106
    %v109 = vtanh.pop %v107
    %v110 = vld [vmem:[%s6] sm:$0x1]
    %v112 = vperm.slane %v110, 0
    %v114 = vmul.f32 %v108, %v112
    %v115 = vmul.f32 %v109, %v112
    %v116 = vsel %vm36, %v114, 0.0
    %117 = vadd.xlane.f32.xlu0 %v116
    %v118 = vpop.xlane.xlu0 %117
    %v119 = vsel %vm36, %v115, 0.0
    %120 = vadd.xlane.f32.xlu0 %v119
    %v121 = vpop.xlane.xlu0 %120
    %v122 = vld [vmem:[%s2] sm:$0x3]
    %vm123 = vcmp.eq.s32.totalorder %v122, 0
    %v126 = vlaneseq
    %v127 = vand.u32 %v126, 127
    %v128 = vperm.slane %v118, %v127
    %v129 = vperm.slane %v121, %v127
    %vm130 = vcmask 1041409
    %v131 = vsel %vm130, %v129, %v128
    %v133 = vsel %vm123, -1e+10, %v131
    %vm134 = vcmask 58368
    %v135 = vsel %vm134, %v133, -inf
    %136 = vmax.xlane.f32.xlu0 %v135
    %v137 = vpop.xlane.xlu0 %136
    %v138 = vsub.f32 %v133, %v137
    %v139 = vmul.f32 %v138, 1.442695
    %v140 = vpow.pop %v139
    %v141 = vsel %vm134, %v140, 0.0
    %142 = vadd.xlane.f32.xlu0 %v141
    %v143 = vpop.xlane.xlu0 %142
    %v144 = vrcp.pop %v143
    %v145 = vmul.f32 %v143, %v144
    %v146 = vsub.f32 2.0, %v145
    %v147 = vmul.f32 %v144, %v146
    %v148 = vmul.f32 %v140, %v147
    %149 = vst.msk [vmem:[#allocation2] sm:$0x3] %vm134, %v148
    // Predicated region
    $region30: #{attention_forward.1} parent=1 // pred_check
      _
    $region31: #{attention_forward.1} parent=1 // pred_check_branch
      %151 = sbr.rel (0) target = $region33
    $region32: #{attention_forward.1} parent=1 // pred_region
      %153 = vsyncadd [#allocation3], 0
      %s155 = sshll.u32 [#allocation2], 4
      %s156 = int_to_ptr.vmem [resolvable:$true] %s155
      %s157 = sshll.u32 %s7, 4
      %s158 = int_to_ptr.hbm [resolvable:$true] %s157
      %160 = dma.vmem_to_hbm [thread:$0]  %s156, 32, %s158, [#allocation3]
    $region33: #{attention_forward.1} parent=1 // pred_fallthru
      _
    // Predicated region
    $region34: #{attention_forward.1} parent=1 // pred_check
      _
    $region35: #{attention_forward.1} parent=1 // pred_check_branch
      %162 = sbr.rel (0) target = $region37
    $region36: #{attention_forward.1} parent=1 // pred_region
      %164 = dma.done [#allocation3], 32
    $region37: #{attention_forward.1} parent=1 // pred_fallthru
      _
    %165 = vsyncpa [#allocation3], 1

</llo_original>
